<compile_context>
chip_gen: v5e
topology: v5e:2x2
jax: 0.10.0
libtpu: 0.0.40
codegen_flags: <defaults>
</compile_context>

<pallas_src>
import functools

import jax
import jax.numpy as jnp
from jax.experimental import pallas as pl
from jax.experimental.pallas import tpu as pltpu


_VMEM = pl.BlockSpec(memory_space=pltpu.MemorySpace.VMEM)
_HID_PAD = 128               # mapper hidden dim (10) zero-padded to lane-friendly 128
_MAX_L2_TILE = 128 * 1024    # feature-axis tile for the loss kernel (512 KiB f32 / block)


def _round_up(x, m):
    return (x + m - 1) // m * m


# ----------------------- fused mapper + latentnorm kernel ------------------

def _mapper_latentnorm_kernel(x_ref, w1_ref, b1_ref, w2_ref, b2_ref,
                              avg_ref, istd_ref, wplus_ref, lnorm_ref,
                              *, radius, n_styles):
    # learned_mapper = Linear(512,10) -> Linear(10,512) -> LeakyReLU(0.2).
    # Hidden dim is zero-padded 10 -> 128; padded units contribute exactly 0,
    # so the result is identical to the unpadded mapper.
    x = x_ref[...].astype(jnp.float32)                                        # (1, 512)
    h = jnp.dot(x, w1_ref[...], preferred_element_type=jnp.float32) + b1_ref[...]   # (1, 128)
    y = jnp.dot(h, w2_ref[...], preferred_element_type=jnp.float32) + b2_ref[...]   # (1, 512)
    lat = jnp.where(y >= 0.0, y, 0.2 * y)                                     # LeakyReLU(0.2)

    # w_plus = latent_avg + learned_mapper(x).expand(18, -1)   (decoder input)
    wplus_ref[...] = jnp.broadcast_to(avg_ref[...] + lat, wplus_ref.shape)

    # _loss_latentnorm on the (18,512) broadcast latent (pre-latent_avg).
    # All 18 rows are identical, so the Frobenius norm is sqrt(18)*row-norm.
    z = jnp.where(lat >= 0.0, lat, 5.0 * lat) * istd_ref[...]                 # (1, 512)
    sq = jnp.sum(z * z, axis=1, keepdims=True) * float(n_styles)              # (1, 1)
    nrm = jnp.sqrt(sq)
    lnorm_ref[...] = jnp.abs(jnp.maximum(nrm, radius) - radius)


def mapper_and_latentnorm(x, w1, b1, w2, b2, latent_avg_2d, inv_std_2d,
                          radius, n_styles):
    """x: (1, 512). Returns (w_plus (n_styles, 512), latentnorm_term (1, 1))."""
    kern = functools.partial(_mapper_latentnorm_kernel,
                             radius=float(radius), n_styles=int(n_styles))
    return pl.pallas_call(
        kern,
        out_shape=(jax.ShapeDtypeStruct((n_styles, w2.shape[1]), jnp.float32),
                   jax.ShapeDtypeStruct((1, 1), jnp.float32)),
        in_specs=[_VMEM] * 7,
        out_specs=(_VMEM, _VMEM),
    )(x, w1, b1, w2, b2, latent_avg_2d, inv_std_2d)


# --------------------------- fused loss kernel ------------------------------

def _loss_kernel(gen_ref, ref_ref, ln_ref, o_ref, acc_ref, *, inv_chw, w_l2, w_ln):
    # L2 term: (gen_im_lr - ref_im).pow(2).mean((1,2,3)).sum(), accumulated
    # over feature-axis tiles.  Final output = w_l2*L2 + w_ln*LATENTNORM.
    @pl.when(pl.program_id(0) == 0)
    def _():
        acc_ref[...] = jnp.zeros_like(acc_ref)

    d = gen_ref[...].astype(jnp.float32) - ref_ref[...].astype(jnp.float32)   # (B, TILE)
    per_im = jnp.sum(d * d, axis=1, keepdims=True)                            # (B, 1)
    acc_ref[...] += jnp.sum(per_im, axis=0, keepdims=True)                    # (1, 1)

    @pl.when(pl.program_id(0) == pl.num_programs(0) - 1)
    def _():
        o_ref[...] = w_l2 * (acc_ref[...] * inv_chw) + w_ln * ln_ref[...]


def fused_loss(gen_im_lr, ref_im, latentnorm_term, w_l2, w_ln):
    """gen_im_lr, ref_im: NCHW. latentnorm_term: (1,1). Returns scalar loss."""
    b = gen_im_lr.shape[0]
    f = int(gen_im_lr.size) // b
    gen_flat = gen_im_lr.reshape(b, f)     # metadata-only reshape; cast inside kernel
    ref_flat = ref_im.reshape(b, f)

    tile = min(_MAX_L2_TILE, _round_up(f, 128))
    f_pad = _round_up(f, tile)
    if f_pad != f:
        # Zero-pad both arrays: padded positions contribute (0-0)^2 = 0.
        gen_flat = jnp.pad(gen_flat, ((0, 0), (0, f_pad - f)))
        ref_flat = jnp.pad(ref_flat, ((0, 0), (0, f_pad - f)))
    n_tiles = f_pad // tile

    kern = functools.partial(_loss_kernel, inv_chw=1.0 / float(f),
                             w_l2=float(w_l2), w_ln=float(w_ln))
    out = pl.pallas_call(
        kern,
        out_shape=jax.ShapeDtypeStruct((1, 1), jnp.float32),
        grid=(n_tiles,),
        in_specs=[pl.BlockSpec((b, tile), lambda i: (0, i)),
                  pl.BlockSpec((b, tile), lambda i: (0, i)),
                  pl.BlockSpec((1, 1), lambda i: (0, 0))],
        out_specs=pl.BlockSpec((1, 1), lambda i: (0, 0)),
        scratch_shapes=[pltpu.VMEM((1, 1), jnp.float32)],
        compiler_params=pltpu.CompilerParams(dimension_semantics=("arbitrary",)),
    )(gen_flat, ref_flat, latentnorm_term)
    return out[0, 0]


# ----------------------------- PULSE module ---------------------------------

class PulsePallas:
    """JAX/Pallas port of PULSE's forward pass (own compute + analytic losses)."""

    def __init__(self, key, ref_im, loss_str="100*L2+0.1*LATENTNORM", eps=2e-3,
                 latent_radius=96.0, embed_d=10, latent_dim=512, n_styles=18):
        assert embed_d <= _HID_PAD
        k1, k2, k3, k4, k5, k6, k7 = jax.random.split(key, 7)
        # fc1: Linear(512, embed_d); fc2: Linear(embed_d, 512) (PyTorch uniform init),
        # then zero-padded along the hidden dim to _HID_PAD (inert padding).
        s1 = 1.0 / jnp.sqrt(float(latent_dim))
        w1 = jax.random.uniform(k1, (latent_dim, embed_d), jnp.float32, -s1, s1)
        b1 = jax.random.uniform(k2, (1, embed_d), jnp.float32, -s1, s1)
        s2 = 1.0 / jnp.sqrt(float(embed_d))
        w2 = jax.random.uniform(k3, (embed_d, latent_dim), jnp.float32, -s2, s2)
        b2 = jax.random.uniform(k4, (1, latent_dim), jnp.float32, -s2, s2)
        self.w1 = jnp.zeros((latent_dim, _HID_PAD), jnp.float32).at[:, :embed_d].set(w1)
        self.b1 = jnp.zeros((1, _HID_PAD), jnp.float32).at[:, :embed_d].set(b1)
        self.w2 = jnp.zeros((_HID_PAD, latent_dim), jnp.float32).at[:embed_d, :].set(w2)
        self.b2 = b2

        # gaussian_fit: deterministic stand-in for stats of psp.decoder.style(z).
        self.gaussian_mean = jax.random.normal(k5, (latent_dim,), jnp.float32) * 0.1
        self.gaussian_std = jnp.abs(jax.random.normal(k6, (latent_dim,), jnp.float32)) + 0.5
        self.inv_std_2d = (1.0 / self.gaussian_std).reshape(1, latent_dim)
        # psp.latent_avg stand-in.
        self.latent_avg = jax.random.normal(k7, (latent_dim,), jnp.float32) * 0.1
        self.latent_avg_2d = self.latent_avg.reshape(1, latent_dim)

        self.ref_im = ref_im.astype(jnp.float32)          # NCHW
        self.latent_radius = float(latent_radius)
        self.eps = eps
        self.n_styles = n_styles
        self.parsed_loss = [term.split("*") for term in loss_str.split("+")]

    def forward(self, latent_in, epoch_in=0, epoch_total=1):
        # learned_mapper(latent_in).expand(18,-1), latent_avg add, and the
        # LATENTNORM term are all produced by one fused pallas_call.
        wplus18, latentnorm_term = mapper_and_latentnorm(
            latent_in, self.w1, self.b1, self.w2, self.b2,
            self.latent_avg_2d, self.inv_std_2d,
            self.latent_radius, self.n_styles)
        w_plus = wplus18[None]                                             # (1, 18, 512)

        # TODO(synk): StyleGAN2 decoder (psp.decoder) and BicubicDownSample have no
        # self-contained Pallas equivalent (pretrained network); use a deterministic
        # latent-dependent stand-in for the low-res generated image instead.
        gen_im_lr = jnp.broadcast_to(
            jnp.tanh(jnp.mean(w_plus)) * 0.5 + 0.5, self.ref_im.shape
        ).astype(jnp.float32)

        # Collect implemented loss weights; fuse L2 + LATENTNORM into one kernel.
        w_l2 = 0.0
        w_ln = 0.0
        for weight, loss_type in self.parsed_loss:
            wgt = float(weight)
            if wgt == 0.0:
                continue
            if loss_type == "L2":
                w_l2 += wgt
            elif loss_type == "LATENTNORM":
                w_ln += wgt
            else:
                # TODO(synk): ARCFACE / LPIPS / VGG losses require external pretrained
                # networks (ArcFace r100, AlexNet-LPIPS, VGG16) and are not implemented.
                continue

        return fused_loss(gen_im_lr, self.ref_im, latentnorm_term, w_l2, w_ln)


# ----------------------------- main ------------------------------------------

if __name__ == "__main__":
    key = jax.random.PRNGKey(0)
    k_ref, k_lat, k_params = jax.random.split(key, 3)

    # ref_im: NCHW, square, small toy size (module asserts 1024 % im_size == 0).
    ref_im = jax.random.uniform(k_ref, (1, 3, 16, 16), jnp.float32)

    model = PulsePallas(k_params, ref_im=ref_im,
                        loss_str="100*L2+0.1*LATENTNORM", eps=2e-3, latent_radius=96.0)

    # latent_in ~ N(0, gaussian_std) like optimize_mapper's initialization, shape (1, 512).
    latent_in = jax.random.normal(k_lat, (1, 512), jnp.float32) * model.gaussian_std[None, :]

    loss = model.forward(latent_in, 0, 1)
    loss = jax.block_until_ready(loss)
    assert loss.shape == () and bool(jnp.isfinite(loss))
    print("KERNEL_OK")
</pallas_src>

<mosaic_0001>
module attributes {stable_mosaic.version = 11 : i64} {
  func.func @_mapper_latentnorm_kernel(%arg0: memref<1x512xf32, #tpu.memory_space<vmem>>, %arg1: memref<512x128xf32, #tpu.memory_space<vmem>>, %arg2: memref<1x128xf32, #tpu.memory_space<vmem>>, %arg3: memref<128x512xf32, #tpu.memory_space<vmem>>, %arg4: memref<1x512xf32, #tpu.memory_space<vmem>>, %arg5: memref<1x512xf32, #tpu.memory_space<vmem>>, %arg6: memref<1x512xf32, #tpu.memory_space<vmem>>, %arg7: memref<18x512xf32, #tpu.memory_space<vmem>>, %arg8: memref<1x1xf32, #tpu.memory_space<vmem>>) attributes {dimension_semantics = [], scalar_prefetch = 0 : i64, scratch_operands = 0 : i64, tpu.core_type = #tpu.core_type<tc>} {
    %c0 = arith.constant 0 : index
    %c0_0 = arith.constant 0 : index
    %0 = vector.load %arg0[%c0, %c0_0] : memref<1x512xf32, #tpu.memory_space<vmem>>, vector<1x512xf32>
    %c0_1 = arith.constant 0 : index
    %c0_2 = arith.constant 0 : index
    %1 = vector.load %arg1[%c0_1, %c0_2] : memref<512x128xf32, #tpu.memory_space<vmem>>, vector<512x128xf32>
    %cst = arith.constant dense<0.000000e+00> : vector<1x128xf32>
    %2 = tpu.matmul %0, %1, %cst {dimension_numbers = #tpu.dot_dimension_numbers<[1], [0], [0], [1], [0, 0, 1, 1], [], []>} : vector<1x512xf32>, vector<512x128xf32>, vector<1x128xf32> -> vector<1x128xf32>
    %c0_3 = arith.constant 0 : index
    %c0_4 = arith.constant 0 : index
    %3 = vector.load %arg2[%c0_3, %c0_4] : memref<1x128xf32, #tpu.memory_space<vmem>>, vector<1x128xf32>
    %4 = arith.addf %2, %3 : vector<1x128xf32>
    %c0_5 = arith.constant 0 : index
    %c0_6 = arith.constant 0 : index
    %5 = vector.load %arg3[%c0_5, %c0_6] : memref<128x512xf32, #tpu.memory_space<vmem>>, vector<128x512xf32>
    %cst_7 = arith.constant dense<0.000000e+00> : vector<1x512xf32>
    %6 = tpu.matmul %4, %5, %cst_7 {dimension_numbers = #tpu.dot_dimension_numbers<[1], [0], [0], [1], [0, 0, 1, 1], [], []>} : vector<1x128xf32>, vector<128x512xf32>, vector<1x512xf32> -> vector<1x512xf32>
    %c0_8 = arith.constant 0 : index
    %c0_9 = arith.constant 0 : index
    %7 = vector.load %arg4[%c0_8, %c0_9] : memref<1x512xf32, #tpu.memory_space<vmem>>, vector<1x512xf32>
    %8 = arith.addf %6, %7 : vector<1x512xf32>
    %cst_10 = arith.constant 0.000000e+00 : f32
    %9 = vector.broadcast %cst_10 : f32 to vector<1x512xf32>
    %10 = arith.cmpf oge, %8, %9 : vector<1x512xf32>
    %cst_11 = arith.constant 2.000000e-01 : f32
    %11 = vector.broadcast %cst_11 : f32 to vector<1x512xf32>
    %12 = arith.mulf %11, %8 : vector<1x512xf32>
    %13 = arith.select %10, %8, %12 : vector<1x512xi1>, vector<1x512xf32>
    %c0_12 = arith.constant 0 : index
    %c0_13 = arith.constant 0 : index
    %14 = vector.load %arg5[%c0_12, %c0_13] : memref<1x512xf32, #tpu.memory_space<vmem>>, vector<1x512xf32>
    %15 = arith.addf %14, %13 : vector<1x512xf32>
    %16 = vector.shape_cast %15 : vector<1x512xf32> to vector<1x512xf32>
    %17 = vector.broadcast %16 : vector<1x512xf32> to vector<18x512xf32>
    %c0_14 = arith.constant 0 : index
    %c0_15 = arith.constant 0 : index
    %18 = vector.load %arg7[%c0_14, %c0_15] : memref<18x512xf32, #tpu.memory_space<vmem>>, vector<18x512xf32>
    tpu.vector_store %arg7[%c0_14, %c0_15], %17 {strides = array<i32>} : memref<18x512xf32, #tpu.memory_space<vmem>>, vector<18x512xf32>,
    %cst_16 = arith.constant 0.000000e+00 : f32
    %19 = vector.broadcast %cst_16 : f32 to vector<1x512xf32>
    %20 = arith.cmpf oge, %13, %19 : vector<1x512xf32>
    %cst_17 = arith.constant 5.000000e+00 : f32
    %21 = vector.broadcast %cst_17 : f32 to vector<1x512xf32>
    %22 = arith.mulf %21, %13 : vector<1x512xf32>
    %23 = arith.select %20, %13, %22 : vector<1x512xi1>, vector<1x512xf32>
    %c0_18 = arith.constant 0 : index
    %c0_19 = arith.constant 0 : index
    %24 = vector.load %arg6[%c0_18, %c0_19] : memref<1x512xf32, #tpu.memory_space<vmem>>, vector<1x512xf32>
    %25 = arith.mulf %23, %24 : vector<1x512xf32>
    %26 = arith.mulf %25, %25 : vector<1x512xf32>
    %cst_20 = arith.constant dense<0.000000e+00> : vector<1xf32>
    %27 = vector.multi_reduction <add>, %26, %cst_20 [1] : vector<1x512xf32> to vector<1xf32>
    %28 = vector.shape_cast %27 : vector<1xf32> to vector<1x1xf32>
    %cst_21 = arith.constant 1.800000e+01 : f32
    %29 = vector.broadcast %cst_21 : f32 to vector<1x1xf32>
    %30 = arith.mulf %28, %29 : vector<1x1xf32>
    %31 = math.sqrt %30 : vector<1x1xf32>
    %cst_22 = arith.constant 9.600000e+01 : f32
    %32 = vector.broadcast %cst_22 : f32 to vector<1x1xf32>
    %33 = arith.maximumf %31, %32 : vector<1x1xf32>
    %cst_23 = arith.constant 9.600000e+01 : f32
    %34 = vector.broadcast %cst_23 : f32 to vector<1x1xf32>
    %35 = arith.subf %33, %34 : vector<1x1xf32>
    %36 = math.absf %35 : vector<1x1xf32>
    %c0_24 = arith.constant 0 : index
    %c0_25 = arith.constant 0 : index
    %37 = vector.load %arg8[%c0_24, %c0_25] : memref<1x1xf32, #tpu.memory_space<vmem>>, vector<1x1xf32>
    tpu.vector_store %arg8[%c0_24, %c0_25], %36 {strides = array<i32>} : memref<1x1xf32, #tpu.memory_space<vmem>>, vector<1x1xf32>,
    return
  }
}

</mosaic_0001>

<llo_original>
// kernel: tpu_custom_call.1
$region0: #{tpu_custom_call.1}
  #allocation0 [shape = 'u32[]', space=smem, size = 0x4, offset = 0x4, fixed_abs, tag = 'smem constant byte address 0x4 - core index']
  #allocation1 [shape = 'u32[72,128]{1,0:T(1,128)}', space=vmem, size = 0x9000, scoped, tag = 'internal scratch']
  %s0 = inlined_call_operand.hbm [shape: f32[1,512], index: 0, kind: input, shape index: {}]
  %s1 = inlined_call_operand.hbm [shape: f32[512,128], index: 1, kind: input, shape index: {}]
  %s2 = inlined_call_operand.hbm [shape: f32[1,128], index: 2, kind: input, shape index: {}]
  %s3 = inlined_call_operand.hbm [shape: f32[128,512], index: 3, kind: input, shape index: {}]
  %s4 = inlined_call_operand.hbm [shape: f32[1,512], index: 4, kind: input, shape index: {}]
  %s5 = inlined_call_operand.vmem [shape: f32[1,512], index: 5, kind: input, shape index: {}]
  %s6 = inlined_call_operand.hbm [shape: f32[1,512], index: 6, kind: input, shape index: {}]
  %s7 = inlined_call_operand.hbm [shape: f32[18,512], index: 7, kind: output, shape index: {0}]
  %s8 = inlined_call_operand.hbm [shape: f32[1,1], index: 8, kind: output, shape index: {1}]
  %9 = xla_tuple %s7, %s8
  %s10 = sld [smem:[#allocation0]]
  $region70: #{tpu_custom_call.1} parent=0
    _
  %s12 = ssub.s32 1, %s10
  %s13 = scalar_select 0, %s12, %s10
  $region1: #{tpu_custom_call.1} parent=0
    #allocation2 [shape = 'u8[2048]{0}', space=vmem, size = 0x800, scoped, tag = 'input window, operand 0, single buffered']
    #allocation3 [shape = 's32[1]{0}', space=sflag, size = 0x4, scoped, tag = 'scoped memory for tpu_custom_call.1']
    #allocation4 [shape = 's32[1]{0}', space=sflag, size = 0x4, scoped, tag = 'scoped memory for tpu_custom_call.1']
    #allocation5 [shape = 'u8[262144]{0}', space=vmem, size = 0x40000, scoped, tag = 'input window, operand 1, single buffered']
    #allocation6 [shape = 's32[1]{0}', space=sflag, size = 0x4, scoped, tag = 'scoped memory for tpu_custom_call.1']
    #allocation7 [shape = 'u8[512]{0}', space=vmem, size = 0x400, scoped, tag = 'input window, operand 2, single buffered']
    #allocation8 [shape = 'u8[262144]{0}', space=vmem, size = 0x40000, scoped, tag = 'input window, operand 3, single buffered']
    #allocation9 [shape = 's32[1]{0}', space=sflag, size = 0x4, scoped, tag = 'scoped memory for tpu_custom_call.1']
    #allocation10 [shape = 'u8[2048]{0}', space=vmem, size = 0x800, scoped, tag = 'input window, operand 4, single buffered']
    #allocation11 [shape = 'u8[2048]{0}', space=vmem, size = 0x800, scoped, tag = 'input window, operand 6, single buffered']
    #allocation12 [shape = 's32[1]{0}', space=sflag, size = 0x4, scoped, tag = 'scoped memory for tpu_custom_call.1']
    #allocation13 [shape = 'u8[49152]{0}', space=vmem, size = 0xc000, scoped, tag = 'output window, operand 0, single buffered']
    #allocation14 [shape = 'u8[512]{0}', space=vmem, size = 0x400, scoped, tag = 'output window, operand 1, single buffered']
    #allocation15 [shape = 's32[1]{0}', space=sflag, size = 0x4, scoped, tag = 'scoped memory for tpu_custom_call.1']
    %14 = vsyncpa [#allocation3], 0
    %15 = vsyncpa [#allocation6], 0
    %16 = vsyncpa [#allocation9], 0
    %17 = vsyncpa [#allocation12], 0
    %18 = vsyncpa [#allocation4], 0
    %19 = vsyncpa [#allocation15], 0
    // Predicated region
    $region2: #{tpu_custom_call.1} parent=1 // pred_check
      _
    $region3: #{tpu_custom_call.1} parent=1 // pred_check_branch
      %21 = sbr.rel (0) target = $region5
    $region4: #{tpu_custom_call.1} parent=1 // pred_region
      %23 = vsyncadd [#allocation3], 0
      %s25 = sshll.u32 %s0, 4
      %s26 = int_to_ptr.hbm [resolvable:$true] %s25
      %s27 = sshll.u32 [#allocation2], 4
      %s28 = int_to_ptr.vmem [resolvable:$true] %s27
      %30 = dma.hbm_to_vmem [thread:$0]  %s26, 64, %s28, [#allocation3]
    $region5: #{tpu_custom_call.1} parent=1 // pred_fallthru
      _
    // Predicated region
    $region6: #{tpu_custom_call.1} parent=1 // pred_check
      _
    $region7: #{tpu_custom_call.1} parent=1 // pred_check_branch
      %32 = sbr.rel (0) target = $region9
    $region8: #{tpu_custom_call.1} parent=1 // pred_region
      %34 = vsyncadd [#allocation6], 0
      %s35 = sshll.u32 %s1, 4
      %s36 = int_to_ptr.hbm [resolvable:$true] %s35
      %s37 = sshll.u32 [#allocation5], 4
      %s38 = int_to_ptr.vmem [resolvable:$true] %s37
      %43 = dma.hbm_to_vmem [thread:$0]  %s36, 8192, %s38, [#allocation6], 128, 128, 8
    $region9: #{tpu_custom_call.1} parent=1 // pred_fallthru
      _
    // Predicated region
    $region10: #{tpu_custom_call.1} parent=1 // pred_check
      _
    $region11: #{tpu_custom_call.1} parent=1 // pred_check_branch
      %45 = sbr.rel (0) target = $region13
    $region12: #{tpu_custom_call.1} parent=1 // pred_region
      %47 = vsyncadd [#allocation6], 0
      %s49 = sshll.u32 %s2, 4
      %s50 = int_to_ptr.hbm [resolvable:$true] %s49
      %s51 = sshll.u32 [#allocation7], 4
      %s52 = int_to_ptr.vmem [resolvable:$true] %s51
      %54 = dma.hbm_to_vmem [thread:$0]  %s50, 16, %s52, [#allocation6]
    $region13: #{tpu_custom_call.1} parent=1 // pred_fallthru
      _
    // Predicated region
    $region14: #{tpu_custom_call.1} parent=1 // pred_check
      _
    $region15: #{tpu_custom_call.1} parent=1 // pred_check_branch
      %56 = sbr.rel (0) target = $region17
    $region16: #{tpu_custom_call.1} parent=1 // pred_region
      %58 = vsyncadd [#allocation9], 0
      %s59 = sshll.u32 %s3, 4
      %s60 = int_to_ptr.hbm [resolvable:$true] %s59
      %s61 = sshll.u32 [#allocation8], 4
      %s62 = int_to_ptr.vmem [resolvable:$true] %s61
      %67 = dma.hbm_to_vmem [thread:$0]  %s60, 8192, %s62, [#allocation9], 512, 512, 32
    $region17: #{tpu_custom_call.1} parent=1 // pred_fallthru
      _
    // Predicated region
    $region18: #{tpu_custom_call.1} parent=1 // pred_check
      _
    $region19: #{tpu_custom_call.1} parent=1 // pred_check_branch
      %69 = sbr.rel (0) target = $region21
    $region20: #{tpu_custom_call.1} parent=1 // pred_region
      %71 = vsyncadd [#allocation9], 0
      %s73 = sshll.u32 %s4, 4
      %s74 = int_to_ptr.hbm [resolvable:$true] %s73
      %s75 = sshll.u32 [#allocation10], 4
      %s76 = int_to_ptr.vmem [resolvable:$true] %s75
      %78 = dma.hbm_to_vmem [thread:$0]  %s74, 64, %s76, [#allocation9]
    $region21: #{tpu_custom_call.1} parent=1 // pred_fallthru
      _
    // Predicated region
    $region22: #{tpu_custom_call.1} parent=1 // pred_check
      _
    $region23: #{tpu_custom_call.1} parent=1 // pred_check_branch
      %80 = sbr.rel (0) target = $region25
    $region24: #{tpu_custom_call.1} parent=1 // pred_region
      _
    $region25: #{tpu_custom_call.1} parent=1 // pred_fallthru
      _
    // Predicated region
    $region26: #{tpu_custom_call.1} parent=1 // pred_check
      _
    $region27: #{tpu_custom_call.1} parent=1 // pred_check_branch
      %82 = sbr.rel (0) target = $region29
    $region28: #{tpu_custom_call.1} parent=1 // pred_region
      %84 = vsyncadd [#allocation12], 0
      %s86 = sshll.u32 %s6, 4
      %s87 = int_to_ptr.hbm [resolvable:$true] %s86
      %s88 = sshll.u32 [#allocation11], 4
      %s89 = int_to_ptr.vmem [resolvable:$true] %s88
      %91 = dma.hbm_to_vmem [thread:$0]  %s87, 64, %s89, [#allocation12]
    $region29: #{tpu_custom_call.1} parent=1 // pred_fallthru
      _
    // Predicated region
    $region30: #{tpu_custom_call.1} parent=1 // pred_check
      _
    $region31: #{tpu_custom_call.1} parent=1 // pred_check_branch
      %93 = sbr.rel (0) target = $region33
    $region32: #{tpu_custom_call.1} parent=1 // pred_region
      %95 = dma.done [#allocation3], 64
    $region33: #{tpu_custom_call.1} parent=1 // pred_fallthru
      _
    // Predicated region
    $region34: #{tpu_custom_call.1} parent=1 // pred_check
      _
    $region35: #{tpu_custom_call.1} parent=1 // pred_check_branch
      %97 = sbr.rel (0) target = $region37
    $region36: #{tpu_custom_call.1} parent=1 // pred_region
      %99 = dma.done [#allocation6], 8192
    $region37: #{tpu_custom_call.1} parent=1 // pred_fallthru
      _
    // Predicated region
    $region38: #{tpu_custom_call.1} parent=1 // pred_check
      _
    $region39: #{tpu_custom_call.1} parent=1 // pred_check_branch
      %101 = sbr.rel (0) target = $region41
    $region40: #{tpu_custom_call.1} parent=1 // pred_region
      %103 = dma.done [#allocation6], 16
    $region41: #{tpu_custom_call.1} parent=1 // pred_fallthru
      _
    // Predicated region
    $region42: #{tpu_custom_call.1} parent=1 // pred_check
      _
    $region43: #{tpu_custom_call.1} parent=1 // pred_check_branch
      %105 = sbr.rel (0) target = $region45
    $region44: #{tpu_custom_call.1} parent=1 // pred_region
      %107 = dma.done [#allocation9], 8192
    $region45: #{tpu_custom_call.1} parent=1 // pred_fallthru
      _
    // Predicated region
    $region46: #{tpu_custom_call.1} parent=1 // pred_check
      _
    $region47: #{tpu_custom_call.1} parent=1 // pred_check_branch
      %109 = sbr.rel (0) target = $region49
    $region48: #{tpu_custom_call.1} parent=1 // pred_region
      %111 = dma.done [#allocation9], 64
    $region49: #{tpu_custom_call.1} parent=1 // pred_fallthru
      _
    // Predicated region
    $region50: #{tpu_custom_call.1} parent=1 // pred_check
      _
    $region51: #{tpu_custom_call.1} parent=1 // pred_check_branch
      %113 = sbr.rel (0) target = $region53
    $region52: #{tpu_custom_call.1} parent=1 // pred_region
      %115 = dma.done [#allocation12], 64
    $region53: #{tpu_custom_call.1} parent=1 // pred_fallthru
      _
    %v116 = vld [vmem:[#allocation2] sm:$0xf]
    %v117 = vld [vmem:[#allocation5] sm:$0xff]
    %v118 = vld [vmem:[#allocation5 + $0x8] sm:$0xff]
    %v119 = vld [vmem:[#allocation5 + $0x10] sm:$0xff]
    %v120 = vld [vmem:[#allocation5 + $0x18] sm:$0xff]
    %v121 = vld [vmem:[#allocation5 + $0x20] sm:$0xff]
    %v122 = vld [vmem:[#allocation5 + $0x28] sm:$0xff]
    %v123 = vld [vmem:[#allocation5 + $0x30] sm:$0xff]
    %v124 = vld [vmem:[#allocation5 + $0x38] sm:$0xff]
    %v125 = vld [vmem:[#allocation5 + $0x40] sm:$0xff]
    %v126 = vld [vmem:[#allocation5 + $0x48] sm:$0xff]
    %v127 = vld [vmem:[#allocation5 + $0x50] sm:$0xff]
    %v128 = vld [vmem:[#allocation5 + $0x58] sm:$0xff]
    %v129 = vld [vmem:[#allocation5 + $0x60] sm:$0xff]
    %v130 = vld [vmem:[#allocation5 + $0x68] sm:$0xff]
    %v131 = vld [vmem:[#allocation5 + $0x70] sm:$0xff]
    %v132 = vld [vmem:[#allocation5 + $0x78] sm:$0xff]
    %v133 = vld [vmem:[#allocation5 + $0x80] sm:$0xff]
    %v134 = vld [vmem:[#allocation5 + $0x88] sm:$0xff]
    %v135 = vld [vmem:[#allocation5 + $0x90] sm:$0xff]
    %v136 = vld [vmem:[#allocation5 + $0x98] sm:$0xff]
    %v137 = vld [vmem:[#allocation5 + $0xa0] sm:$0xff]
    %v138 = vld [vmem:[#allocation5 + $0xa8] sm:$0xff]
    %v139 = vld [vmem:[#allocation5 + $0xb0] sm:$0xff]
    %v140 = vld [vmem:[#allocation5 + $0xb8] sm:$0xff]
    %v141 = vld [vmem:[#allocation5 + $0xc0] sm:$0xff]
    %v142 = vld [vmem:[#allocation5 + $0xc8] sm:$0xff]
    %v143 = vld [vmem:[#allocation5 + $0xd0] sm:$0xff]
    %v144 = vld [vmem:[#allocation5 + $0xd8] sm:$0xff]
    %v145 = vld [vmem:[#allocation5 + $0xe0] sm:$0xff]
    %v146 = vld [vmem:[#allocation5 + $0xe8] sm:$0xff]
    %v147 = vld [vmem:[#allocation5 + $0xf0] sm:$0xff]
    %v148 = vld [vmem:[#allocation5 + $0xf8] sm:$0xff]
    %v149 = vld [vmem:[#allocation5 + $0x100] sm:$0xff]
    %v150 = vld [vmem:[#allocation5 + $0x108] sm:$0xff]
    %v151 = vld [vmem:[#allocation5 + $0x110] sm:$0xff]
    %v152 = vld [vmem:[#allocation5 + $0x118] sm:$0xff]
    %v153 = vld [vmem:[#allocation5 + $0x120] sm:$0xff]
    %v154 = vld [vmem:[#allocation5 + $0x128] sm:$0xff]
    %v155 = vld [vmem:[#allocation5 + $0x130] sm:$0xff]
    %v156 = vld [vmem:[#allocation5 + $0x138] sm:$0xff]
    %v157 = vld [vmem:[#allocation5 + $0x140] sm:$0xff]
    %v158 = vld [vmem:[#allocation5 + $0x148] sm:$0xff]
    %v159 = vld [vmem:[#allocation5 + $0x150] sm:$0xff]
    %v160 = vld [vmem:[#allocation5 + $0x158] sm:$0xff]
    %v161 = vld [vmem:[#allocation5 + $0x160] sm:$0xff]
    %v162 = vld [vmem:[#allocation5 + $0x168] sm:$0xff]
    %v163 = vld [vmem:[#allocation5 + $0x170] sm:$0xff]
    %v164 = vld [vmem:[#allocation5 + $0x178] sm:$0xff]
    %v165 = vld [vmem:[#allocation5 + $0x180] sm:$0xff]
    %v166 = vld [vmem:[#allocation5 + $0x188] sm:$0xff]
    %v167 = vld [vmem:[#allocation5 + $0x190] sm:$0xff]
    %v168 = vld [vmem:[#allocation5 + $0x198] sm:$0xff]
    %v169 = vld [vmem:[#allocation5 + $0x1a0] sm:$0xff]
    %v170 = vld [vmem:[#allocation5 + $0x1a8] sm:$0xff]
    %v171 = vld [vmem:[#allocation5 + $0x1b0] sm:$0xff]
    %v172 = vld [vmem:[#allocation5 + $0x1b8] sm:$0xff]
    %v173 = vld [vmem:[#allocation5 + $0x1c0] sm:$0xff]
    %v174 = vld [vmem:[#allocation5 + $0x1c8] sm:$0xff]
    %v175 = vld [vmem:[#allocation5 + $0x1d0] sm:$0xff]
    %v176 = vld [vmem:[#allocation5 + $0x1d8] sm:$0xff]
    %v177 = vld [vmem:[#allocation5 + $0x1e0] sm:$0xff]
    %v178 = vld [vmem:[#allocation5 + $0x1e8] sm:$0xff]
    %v179 = vld [vmem:[#allocation5 + $0x1f0] sm:$0xff]
    %v180 = vld [vmem:[#allocation5 + $0x1f8] sm:$0xff]
    %v181 = vld [vmem:[#allocation7] sm:$0x1]
    %v183 = vperm.slane %v116, 0
    %v184 = vperm.slane %v116, 1
    %v185 = vperm.slane %v116, 2
    %v186 = vperm.slane %v116, 3
    %191 = vmatpush.msra.mxu0 %v132
    %192 = vmatpush.msra.mxu0 %v131
    %193 = vmatpush.msra.mxu0 %v130
    %194 = vmatpush.msra.mxu0 %v129
    %195 = vmatpush.msra.mxu0 %v128
    %196 = vmatpush.msra.mxu0 %v127
    %197 = vmatpush.msra.mxu0 %v126
    %198 = vmatpush.msra.mxu0 %v125
    %199 = vmatpush.msra.mxu0 %v124
    %200 = vmatpush.msra.mxu0 %v123
    %201 = vmatpush.msra.mxu0 %v122
    %202 = vmatpush.msra.mxu0 %v121
    %203 = vmatpush.msra.mxu0 %v120
    %204 = vmatpush.msra.mxu0 %v119
    %205 = vmatpush.msra.mxu0 %v118
    %206 = vmatpush.msra.mxu0 %v117
    %207 = vmatmul.f32.gmra.mxu0 %v183
    %v208 = vpop.f32.mrf.mxu0
    %v209 = vadd.f32 %v181, %v208
    %210 = vdwg.mxu0
    %211 = vmatpush.msra.mxu0 %v148
    %212 = vmatpush.msra.mxu0 %v147
    %213 = vmatpush.msra.mxu0 %v146
    %214 = vmatpush.msra.mxu0 %v145
    %215 = vmatpush.msra.mxu0 %v144
    %216 = vmatpush.msra.mxu0 %v143
    %217 = vmatpush.msra.mxu0 %v142
    %218 = vmatpush.msra.mxu0 %v141
    %219 = vmatpush.msra.mxu0 %v140
    %220 = vmatpush.msra.mxu0 %v139
    %221 = vmatpush.msra.mxu0 %v138
    %222 = vmatpush.msra.mxu0 %v137
    %223 = vmatpush.msra.mxu0 %v136
    %224 = vmatpush.msra.mxu0 %v135
    %225 = vmatpush.msra.mxu0 %v134
    %226 = vmatpush.msra.mxu0 %v133
    %227 = vmatmul.f32.gmra.mxu0 %v184
    %v228 = vpop.f32.mrf.mxu0
    %v229 = vadd.f32 %v209, %v228
    %230 = vdwg.mxu0
    %231 = vmatpush.msra.mxu0 %v164
    %232 = vmatpush.msra.mxu0 %v163
    %233 = vmatpush.msra.mxu0 %v162
    %234 = vmatpush.msra.mxu0 %v161
    %235 = vmatpush.msra.mxu0 %v160
    %236 = vmatpush.msra.mxu0 %v159
    %237 = vmatpush.msra.mxu0 %v158
    %238 = vmatpush.msra.mxu0 %v157
    %239 = vmatpush.msra.mxu0 %v156
    %240 = vmatpush.msra.mxu0 %v155
    %241 = vmatpush.msra.mxu0 %v154
    %242 = vmatpush.msra.mxu0 %v153
    %243 = vmatpush.msra.mxu0 %v152
    %244 = vmatpush.msra.mxu0 %v151
    %245 = vmatpush.msra.mxu0 %v150
    %246 = vmatpush.msra.mxu0 %v149
    %247 = vmatmul.f32.gmra.mxu0 %v185
    %v248 = vpop.f32.mrf.mxu0
    %v249 = vadd.f32 %v229, %v248
    %250 = vdwg.mxu0
    %251 = vmatpush.msra.mxu0 %v180
    %252 = vmatpush.msra.mxu0 %v179
    %253 = vmatpush.msra.mxu0 %v178
    %254 = vmatpush.msra.mxu0 %v177
    %255 = vmatpush.msra.mxu0 %v176
    %256 = vmatpush.msra.mxu0 %v175
    %257 = vmatpush.msra.mxu0 %v174
    %258 = vmatpush.msra.mxu0 %v173
    %259 = vmatpush.msra.mxu0 %v172
    %260 = vmatpush.msra.mxu0 %v171
    %261 = vmatpush.msra.mxu0 %v170
    %262 = vmatpush.msra.mxu0 %v169
    %263 = vmatpush.msra.mxu0 %v168
    %264 = vmatpush.msra.mxu0 %v167
    %265 = vmatpush.msra.mxu0 %v166
    %266 = vmatpush.msra.mxu0 %v165
    %267 = vmatmul.f32.gmra.mxu0 %v186
    %v268 = vpop.f32.mrf.mxu0
    %v269 = vadd.f32 %v249, %v268
    %270 = vdwg.mxu0
    %v271 = vld [vmem:[#allocation8] sm:$0xff]
    %v272 = vld [vmem:[#allocation8 + $0x8] sm:$0xff]
    %v273 = vld [vmem:[#allocation8 + $0x10] sm:$0xff]
    %v274 = vld [vmem:[#allocation8 + $0x18] sm:$0xff]
    %v275 = vld [vmem:[#allocation8 + $0x20] sm:$0xff]
    %v276 = vld [vmem:[#allocation8 + $0x28] sm:$0xff]
    %v277 = vld [vmem:[#allocation8 + $0x30] sm:$0xff]
    %v278 = vld [vmem:[#allocation8 + $0x38] sm:$0xff]
    %v279 = vld [vmem:[#allocation8 + $0x40] sm:$0xff]
    %v280 = vld [vmem:[#allocation8 + $0x48] sm:$0xff]
    %v281 = vld [vmem:[#allocation8 + $0x50] sm:$0xff]
    %v282 = vld [vmem:[#allocation8 + $0x58] sm:$0xff]
    %v283 = vld [vmem:[#allocation8 + $0x60] sm:$0xff]
    %v284 = vld [vmem:[#allocation8 + $0x68] sm:$0xff]
    %v285 = vld [vmem:[#allocation8 + $0x70] sm:$0xff]
    %v286 = vld [vmem:[#allocation8 + $0x78] sm:$0xff]
    %v287 = vld [vmem:[#allocation8 + $0x80] sm:$0xff]
    %v288 = vld [vmem:[#allocation8 + $0x88] sm:$0xff]
    %v289 = vld [vmem:[#allocation8 + $0x90] sm:$0xff]
    %v290 = vld [vmem:[#allocation8 + $0x98] sm:$0xff]
    %v291 = vld [vmem:[#allocation8 + $0xa0] sm:$0xff]
    %v292 = vld [vmem:[#allocation8 + $0xa8] sm:$0xff]
    %v293 = vld [vmem:[#allocation8 + $0xb0] sm:$0xff]
    %v294 = vld [vmem:[#allocation8 + $0xb8] sm:$0xff]
    %v295 = vld [vmem:[#allocation8 + $0xc0] sm:$0xff]
    %v296 = vld [vmem:[#allocation8 + $0xc8] sm:$0xff]
    %v297 = vld [vmem:[#allocation8 + $0xd0] sm:$0xff]
    %v298 = vld [vmem:[#allocation8 + $0xd8] sm:$0xff]
    %v299 = vld [vmem:[#allocation8 + $0xe0] sm:$0xff]
    %v300 = vld [vmem:[#allocation8 + $0xe8] sm:$0xff]
    %v301 = vld [vmem:[#allocation8 + $0xf0] sm:$0xff]
    %v302 = vld [vmem:[#allocation8 + $0xf8] sm:$0xff]
    %v303 = vld [vmem:[#allocation8 + $0x100] sm:$0xff]
    %v304 = vld [vmem:[#allocation8 + $0x108] sm:$0xff]
    %v305 = vld [vmem:[#allocation8 + $0x110] sm:$0xff]
    %v306 = vld [vmem:[#allocation8 + $0x118] sm:$0xff]
    %v307 = vld [vmem:[#allocation8 + $0x120] sm:$0xff]
    %v308 = vld [vmem:[#allocation8 + $0x128] sm:$0xff]
    %v309 = vld [vmem:[#allocation8 + $0x130] sm:$0xff]
    %v310 = vld [vmem:[#allocation8 + $0x138] sm:$0xff]
    %v311 = vld [vmem:[#allocation8 + $0x140] sm:$0xff]
    %v312 = vld [vmem:[#allocation8 + $0x148] sm:$0xff]
    %v313 = vld [vmem:[#allocation8 + $0x150] sm:$0xff]
    %v314 = vld [vmem:[#allocation8 + $0x158] sm:$0xff]
    %v315 = vld [vmem:[#allocation8 + $0x160] sm:$0xff]
    %v316 = vld [vmem:[#allocation8 + $0x168] sm:$0xff]
    %v317 = vld [vmem:[#allocation8 + $0x170] sm:$0xff]
    %v318 = vld [vmem:[#allocation8 + $0x178] sm:$0xff]
    %v319 = vld [vmem:[#allocation8 + $0x180] sm:$0xff]
    %v320 = vld [vmem:[#allocation8 + $0x188] sm:$0xff]
    %v321 = vld [vmem:[#allocation8 + $0x190] sm:$0xff]
    %v322 = vld [vmem:[#allocation8 + $0x198] sm:$0xff]
    %v323 = vld [vmem:[#allocation8 + $0x1a0] sm:$0xff]
    %v324 = vld [vmem:[#allocation8 + $0x1a8] sm:$0xff]
    %v325 = vld [vmem:[#allocation8 + $0x1b0] sm:$0xff]
    %v326 = vld [vmem:[#allocation8 + $0x1b8] sm:$0xff]
    %v327 = vld [vmem:[#allocation8 + $0x1c0] sm:$0xff]
    %v328 = vld [vmem:[#allocation8 + $0x1c8] sm:$0xff]
    %v329 = vld [vmem:[#allocation8 + $0x1d0] sm:$0xff]
    %v330 = vld [vmem:[#allocation8 + $0x1d8] sm:$0xff]
    %v331 = vld [vmem:[#allocation8 + $0x1e0] sm:$0xff]
    %v332 = vld [vmem:[#allocation8 + $0x1e8] sm:$0xff]
    %v333 = vld [vmem:[#allocation8 + $0x1f0] sm:$0xff]
    %v334 = vld [vmem:[#allocation8 + $0x1f8] sm:$0xff]
    %v335 = vld [vmem:[#allocation10] sm:$0xf]
    %v337 = vperm.slane %v335, 0
    %v338 = vperm.slane %v335, 1
    %v339 = vperm.slane %v335, 2
    %v340 = vperm.slane %v335, 3
    %345 = vmatpush.msra.mxu0 %v331
    %346 = vmatpush.msra.mxu0 %v327
    %347 = vmatpush.msra.mxu0 %v323
    %348 = vmatpush.msra.mxu0 %v319
    %349 = vmatpush.msra.mxu0 %v315
    %350 = vmatpush.msra.mxu0 %v311
    %351 = vmatpush.msra.mxu0 %v307
    %352 = vmatpush.msra.mxu0 %v303
    %353 = vmatpush.msra.mxu0 %v299
    %354 = vmatpush.msra.mxu0 %v295
    %355 = vmatpush.msra.mxu0 %v291
    %356 = vmatpush.msra.mxu0 %v287
    %357 = vmatpush.msra.mxu0 %v283
    %358 = vmatpush.msra.mxu0 %v279
    %359 = vmatpush.msra.mxu0 %v275
    %360 = vmatpush.msra.mxu0 %v271
    %361 = vmatmul.f32.gmra.mxu0 %v269
    %v362 = vpop.f32.mrf.mxu0
    %v363 = vadd.f32 %v337, %v362
    %364 = vdwg.mxu0
    %365 = vmatpush.msra.mxu0 %v332
    %366 = vmatpush.msra.mxu0 %v328
    %367 = vmatpush.msra.mxu0 %v324
    %368 = vmatpush.msra.mxu0 %v320
    %369 = vmatpush.msra.mxu0 %v316
    %370 = vmatpush.msra.mxu0 %v312
    %371 = vmatpush.msra.mxu0 %v308
    %372 = vmatpush.msra.mxu0 %v304
    %373 = vmatpush.msra.mxu0 %v300
    %374 = vmatpush.msra.mxu0 %v296
    %375 = vmatpush.msra.mxu0 %v292
    %376 = vmatpush.msra.mxu0 %v288
    %377 = vmatpush.msra.mxu0 %v284
    %378 = vmatpush.msra.mxu0 %v280
    %379 = vmatpush.msra.mxu0 %v276
    %380 = vmatpush.msra.mxu0 %v272
    %381 = vmatmul.f32.gmra.mxu0 %v269
    %v382 = vpop.f32.mrf.mxu0
    %v383 = vadd.f32 %v338, %v382
    %384 = vdwg.mxu0
    %385 = vmatpush.msra.mxu0 %v333
    %386 = vmatpush.msra.mxu0 %v329
    %387 = vmatpush.msra.mxu0 %v325
    %388 = vmatpush.msra.mxu0 %v321
    %389 = vmatpush.msra.mxu0 %v317
    %390 = vmatpush.msra.mxu0 %v313
    %391 = vmatpush.msra.mxu0 %v309
    %392 = vmatpush.msra.mxu0 %v305
    %393 = vmatpush.msra.mxu0 %v301
    %394 = vmatpush.msra.mxu0 %v297
    %395 = vmatpush.msra.mxu0 %v293
    %396 = vmatpush.msra.mxu0 %v289
    %397 = vmatpush.msra.mxu0 %v285
    %398 = vmatpush.msra.mxu0 %v281
    %399 = vmatpush.msra.mxu0 %v277
    %400 = vmatpush.msra.mxu0 %v273
    %401 = vmatmul.f32.gmra.mxu0 %v269
    %v402 = vpop.f32.mrf.mxu0
    %v403 = vadd.f32 %v339, %v402
    %404 = vdwg.mxu0
    %405 = vmatpush.msra.mxu0 %v334
    %406 = vmatpush.msra.mxu0 %v330
    %407 = vmatpush.msra.mxu0 %v326
    %408 = vmatpush.msra.mxu0 %v322
    %409 = vmatpush.msra.mxu0 %v318
    %410 = vmatpush.msra.mxu0 %v314
    %411 = vmatpush.msra.mxu0 %v310
    %412 = vmatpush.msra.mxu0 %v306
    %413 = vmatpush.msra.mxu0 %v302
    %414 = vmatpush.msra.mxu0 %v298
    %415 = vmatpush.msra.mxu0 %v294
    %416 = vmatpush.msra.mxu0 %v290
    %417 = vmatpush.msra.mxu0 %v286
    %418 = vmatpush.msra.mxu0 %v282
    %419 = vmatpush.msra.mxu0 %v278
    %420 = vmatpush.msra.mxu0 %v274
    %421 = vmatmul.f32.gmra.mxu0 %v269
    %v422 = vpop.f32.mrf.mxu0
    %v423 = vadd.f32 %v340, %v422
    %424 = vdwg.mxu0
    %vm425 = vcmp.ge.f32.partialorder %v363, 0.0
    %vm426 = vcmp.ge.f32.partialorder %v383, 0.0
    %vm427 = vcmp.ge.f32.partialorder %v403, 0.0
    %vm428 = vcmp.ge.f32.partialorder %v423, 0.0
    %v429 = vmul.f32 %v363, 0.2
    %v430 = vmul.f32 %v383, 0.2
    %v431 = vmul.f32 %v403, 0.2
    %v432 = vmul.f32 %v423, 0.2
    %v433 = vsel %vm425, %v363, %v429
    %v434 = vsel %vm426, %v383, %v430
    %v435 = vsel %vm427, %v403, %v431
    %v436 = vsel %vm428, %v423, %v432
    %v437 = vld [vmem:[%s5] sm:$0xf]
    %v442 = vrot.slane %v434, 7
    %v443 = vrot.slane %v435, 6
    %v444 = vrot.slane %v436, 5
    %vm445 = vcmask 1040384
    %v446 = vsel %vm445, %v433, %v442
    %vm447 = vcmask 1042434
    %v448 = vsel %vm447, %v443, %v444
    %vm449 = vcmask 1041408
    %v450 = vsel %vm449, %v446, %v448
    %v452 = vadd.f32 %v437, %v450
    %v454 = vperm.slane %v452, 0
    %v455 = vperm.slane %v452, 1
    %v456 = vperm.slane %v452, 2
    %v457 = vperm.slane %v452, 3
    %462 = vst [vmem:[#allocation13] sm:$0xff] %v454
    %463 = vst [vmem:[#allocation13 + $0x8] sm:$0xff] %v455
    %464 = vst [vmem:[#allocation13 + $0x10] sm:$0xff] %v456
    %465 = vst [vmem:[#allocation13 + $0x18] sm:$0xff] %v457
    %466 = vst [vmem:[#allocation13 + $0x20] sm:$0xff] %v454
    %467 = vst [vmem:[#allocation13 + $0x28] sm:$0xff] %v455
    %468 = vst [vmem:[#allocation13 + $0x30] sm:$0xff] %v456
    %469 = vst [vmem:[#allocation13 + $0x38] sm:$0xff] %v457
    %470 = vst [vmem:[#allocation13 + $0x40] sm:$0x3] %v454
    %471 = vst [vmem:[#allocation13 + $0x48] sm:$0x3] %v455
    %472 = vst [vmem:[#allocation13 + $0x50] sm:$0x3] %v456
    %473 = vst [vmem:[#allocation13 + $0x58] sm:$0x3] %v457
    %vm474 = vcmp.ge.f32.partialorder %v433, 0.0
    %vm475 = vcmp.ge.f32.partialorder %v434, 0.0
    %vm476 = vcmp.ge.f32.partialorder %v435, 0.0
    %vm477 = vcmp.ge.f32.partialorder %v436, 0.0
    %v478 = vmul.f32 %v433, 5.0
    %v479 = vmul.f32 %v434, 5.0
    %v480 = vmul.f32 %v435, 5.0
    %v481 = vmul.f32 %v436, 5.0
    %v482 = vsel %vm474, %v433, %v478
    %v483 = vsel %vm475, %v434, %v479
    %v484 = vsel %vm476, %v435, %v480
    %v485 = vsel %vm477, %v436, %v481
    %v486 = vld [vmem:[#allocation11] sm:$0xf]
    %v488 = vperm.slane %v486, 0
    %v489 = vperm.slane %v486, 1
    %v490 = vperm.slane %v486, 2
    %v491 = vperm.slane %v486, 3
    %v496 = vmul.f32 %v482, %v488
    %v497 = vmul.f32 %v483, %v489
    %v498 = vmul.f32 %v484, %v490
    %v499 = vmul.f32 %v485, %v491
    %v500 = vmul.f32 %v496, %v496
    %v501 = vmul.f32 %v497, %v497
    %v502 = vmul.f32 %v498, %v498
    %v503 = vmul.f32 %v499, %v499
    %v504 = vsel %vm445, %v500, 0.0
    %v505 = vsel %vm445, %v501, 0.0
    %v506 = vadd.f32 %v504, %v505
    %v507 = vsel %vm445, %v502, 0.0
    %v508 = vadd.f32 %v506, %v507
    %v509 = vsel %vm445, %v503, 0.0
    %v510 = vadd.f32 %v508, %v509
    %511 = vadd.xlane.f32.xlu0 %v510
    %v512 = vpop.xlane.xlu0 %511
    %v513 = vmul.f32 %v512, 18.0
    %v514 = vrsqrt.pop %v513
    %v515 = vmul.f32 %v514, %v513
    %v516 = vmul.f32 %v515, %v514
    %v517 = vmul.f32 0.5, %v516
    %v518 = vsub.f32 1.5, %v517
    %v519 = vmul.f32 %v514, %v518
    %v520 = vmul.f32 %v513, %v519
    %vm521 = vcmp.eq.f32.partialorder %v513, inf
    %v522 = vsel %vm521, %v513, %v520
    %vm523 = vcmp.eq.f32.partialorder %v513, 0.0
    %v524 = vand.u32 %v513, 2147483648
    %v525 = vsel %vm523, %v524, %v522
    %v526 = vmax.f32 %v525, 96.0
    %v527 = vsub.f32 %v526, 96.0
    %v528 = vand.u32 2147483647, %v527
    %vm529 = vcmask 0
    %530 = vst.msk [vmem:[#allocation14] sm:$0x1] %vm529, %v528
    // Predicated region
    $region54: #{tpu_custom_call.1} parent=1 // pred_check
      _
    $region55: #{tpu_custom_call.1} parent=1 // pred_check_branch
      %532 = sbr.rel (0) target = $region57
    $region56: #{tpu_custom_call.1} parent=1 // pred_region
      %534 = vsyncadd [#allocation4], 0
      %s535 = sshll.u32 [#allocation13], 4
      %s536 = int_to_ptr.vmem [resolvable:$true] %s535
      %s537 = sshll.u32 %s7, 4
      %s538 = int_to_ptr.hbm [resolvable:$true] %s537
      %543 = dma.vmem_to_hbm [thread:$0]  %s536, 1536, %s538, [#allocation4], 512, 512, 32
    $region57: #{tpu_custom_call.1} parent=1 // pred_fallthru
      _
    // Predicated region
    $region58: #{tpu_custom_call.1} parent=1 // pred_check
      _
    $region59: #{tpu_custom_call.1} parent=1 // pred_check_branch
      %545 = sbr.rel (0) target = $region61
    $region60: #{tpu_custom_call.1} parent=1 // pred_region
      %547 = vsyncadd [#allocation15], 0
      %s549 = sshll.u32 [#allocation14], 4
      %s550 = int_to_ptr.vmem [resolvable:$true] %s549
      %s551 = sshll.u32 %s8, 4
      %s552 = int_to_ptr.hbm [resolvable:$true] %s551
      %554 = dma.vmem_to_hbm [thread:$0]  %s550, 16, %s552, [#allocation15]
    $region61: #{tpu_custom_call.1} parent=1 // pred_fallthru
      _
    // Predicated region
    $region62: #{tpu_custom_call.1} parent=1 // pred_check
      _
    $region63: #{tpu_custom_call.1} parent=1 // pred_check_branch
      %556 = sbr.rel (0) target = $region65
    $region64: #{tpu_custom_call.1} parent=1 // pred_region
      %558 = dma.done [#allocation4], 1536
    $region65: #{tpu_custom_call.1} parent=1 // pred_fallthru
      _
    // Predicated region
    $region66: #{tpu_custom_call.1} parent=1 // pred_check
      _
    $region67: #{tpu_custom_call.1} parent=1 // pred_check_branch
      %560 = sbr.rel (0) target = $region69
    $region68: #{tpu_custom_call.1} parent=1 // pred_region
      %562 = dma.done [#allocation15], 16
    $region69: #{tpu_custom_call.1} parent=1 // pred_fallthru
      _
    %563 = vsyncpa [#allocation3], 1
    %564 = vsyncpa [#allocation6], 1
    %565 = vsyncpa [#allocation9], 1
    %566 = vsyncpa [#allocation12], 1
    %567 = vsyncpa [#allocation4], 1
    %568 = vsyncpa [#allocation15], 1

</llo_original>
